<compile_context>
chip_gen: v7x
topology: tpu7x:2x2x1
jax: 0.10.0
libtpu: 0.0.40
codegen_flags: <defaults>
</compile_context>

<pallas_src>
import functools

import jax
import jax.numpy as jnp
from jax.experimental import pallas as pl
from jax.experimental.pallas import tpu as pltpu


# ----------------------------- Pallas kernel ----------------------------------


def _fair_forward_kernel(x_ref, wm_ref, bm_ref,
                         w1_ref, b1_ref, w2_ref, b2_ref, w3_ref, b3_ref,
                         pred_ref, adv_ref):
    """One batch tile of FairModel.forward.

    x_ref : (TB, D_in) bf16.  Weights bf16, biases f32.  Outputs f32, lane-padded.
    """
    bf16 = jnp.bfloat16

    # Hoist bias broadcasts once per grid step (JAX does not CSE broadcast_in_dim).
    bm = bm_ref[...]
    b1 = b1_ref[...]
    b2 = b2_ref[...]
    b3 = b3_ref[...]

    # Wrapped model: single Linear.  bf16 operands, f32 MXU accumulation.
    pred = jnp.dot(x_ref[...], wm_ref[...],
                   preferred_element_type=jnp.float32) + bm
    pred_ref[...] = pred.astype(pred_ref.dtype)

    # Adversary net: Linear -> ReLU -> Linear -> ReLU -> Linear (logits).
    h = jnp.dot(pred.astype(bf16), w1_ref[...],
                preferred_element_type=jnp.float32) + b1
    h = jnp.maximum(h, 0.0)
    h = jnp.dot(h.astype(bf16), w2_ref[...],
                preferred_element_type=jnp.float32) + b2
    h = jnp.maximum(h, 0.0)
    adv = jnp.dot(h.astype(bf16), w3_ref[...],
                  preferred_element_type=jnp.float32) + b3
    adv_ref[...] = adv.astype(adv_ref.dtype)


# ----------------------------- wrapper -----------------------------------------


_DEFAULT_TB = 512  # batch-tile rows; >=512 keeps per-grid-step overhead negligible


def _round_up(n, m):
    return ((n + m - 1) // m) * m


def _pad2d(a, rows, cols):
    r, c = a.shape
    return jnp.pad(a, ((0, rows - r), (0, cols - c)))


def prepare_fair_model_params(params):
    """One-time transform of PyTorch-convention params into kernel layout.

    Transposes each (out, in) weight to (in, out), zero-pads feature dims to a multiple
    of 128 (lane), casts weights to bf16 and biases to f32.  Done once at init so the
    per-call path carries no transpose/pad HBM traffic.
    """
    (wm, bm), (w1, b1), (w2, b2), (w3, b3) = params

    out_size, d_in = wm.shape
    width = w1.shape[0]
    n_groups = w3.shape[0]

    out_p = _round_up(out_size, 128)
    w_p = _round_up(width, 128)
    g_p = _round_up(n_groups, 128)

    f32, bf16 = jnp.float32, jnp.bfloat16
    padded = (
        _pad2d(wm.T.astype(f32), d_in, out_p).astype(bf16),   # (D_in, Out_p)
        _pad2d(bm.astype(f32)[None, :], 1, out_p),             # (1, Out_p)
        _pad2d(w1.T.astype(f32), out_p, w_p).astype(bf16),     # (Out_p, W_p)
        _pad2d(b1.astype(f32)[None, :], 1, w_p),                # (1, W_p)
        _pad2d(w2.T.astype(f32), w_p, w_p).astype(bf16),        # (W_p, W_p)
        _pad2d(b2.astype(f32)[None, :], 1, w_p),                # (1, W_p)
        _pad2d(w3.T.astype(f32), w_p, g_p).astype(bf16),        # (W_p, G_p)
        _pad2d(b3.astype(f32)[None, :], 1, g_p),                # (1, G_p)
    )
    return padded, out_size, n_groups


@functools.partial(jax.jit, static_argnames=("out_size", "n_groups"))
def fair_model_forward(x, padded_params, *, out_size, n_groups):
    """FairModel.forward(x) -> (model_prediction, adversary_prediction)."""
    wm_p, bm_p, w1_p, b1_p, w2_p, b2_p, w3_p, b3_p = padded_params

    B, d_in = x.shape
    out_p = wm_p.shape[1]
    w_p = w2_p.shape[0]
    g_p = w3_p.shape[1]

    # Batch tile: multiple of 8 (sublane), capped by the rounded-up batch size.
    tb = min(_DEFAULT_TB, _round_up(B, 8))
    b_pad = _round_up(B, tb)

    x_bf = x.astype(jnp.bfloat16)
    if b_pad != B:
        # Pad only the batch dim (no feature-dim pad pass); padded rows sliced off below.
        x_bf = jnp.pad(x_bf, ((0, b_pad - B), (0, 0)))

    grid = (b_pad // tb,)

    flops = 2 * b_pad * (d_in * out_p + out_p * w_p + w_p * w_p + w_p * g_p)
    bytes_accessed = (
        x_bf.size * 2
        + sum(int(p.size) * p.dtype.itemsize for p in padded_params)
        + b_pad * (out_p + g_p) * 4
    )

    pred_p, adv_p = pl.pallas_call(
        _fair_forward_kernel,
        out_shape=(
            jax.ShapeDtypeStruct((b_pad, out_p), jnp.float32),
            jax.ShapeDtypeStruct((b_pad, g_p), jnp.float32),
        ),
        grid=grid,
        in_specs=[
            pl.BlockSpec((tb, d_in), lambda i: (i, 0)),       # x: streamed batch tiles
            pl.BlockSpec((d_in, out_p), lambda i: (0, 0)),    # weights/biases: resident
            pl.BlockSpec((1, out_p), lambda i: (0, 0)),
            pl.BlockSpec((out_p, w_p), lambda i: (0, 0)),
            pl.BlockSpec((1, w_p), lambda i: (0, 0)),
            pl.BlockSpec((w_p, w_p), lambda i: (0, 0)),
            pl.BlockSpec((1, w_p), lambda i: (0, 0)),
            pl.BlockSpec((w_p, g_p), lambda i: (0, 0)),
            pl.BlockSpec((1, g_p), lambda i: (0, 0)),
        ],
        out_specs=(
            pl.BlockSpec((tb, out_p), lambda i: (i, 0)),
            pl.BlockSpec((tb, g_p), lambda i: (i, 0)),
        ),
        compiler_params=pltpu.CompilerParams(
            dimension_semantics=("parallel",)),  # megacore: batch tiles over v7x's 2 TCs
        cost_estimate=pl.CostEstimate(
            flops=flops, transcendentals=0, bytes_accessed=bytes_accessed),
    )(x_bf, wm_p, bm_p, w1_p, b1_p, w2_p, b2_p, w3_p, b3_p)

    model_prediction = pred_p[:B, :out_size]
    adversary_prediction = adv_p[:B, :n_groups]
    return model_prediction, adversary_prediction


# ----------------------------- parameter init ----------------------------------


def _linear_init(key, out_features, in_features):
    # PyTorch nn.Linear default: U(-1/sqrt(in), 1/sqrt(in)) for weight and bias.
    kw, kb = jax.random.split(key)
    bound = 1.0 / jnp.sqrt(jnp.float32(in_features))
    w = jax.random.uniform(kw, (out_features, in_features), jnp.float32, -bound, bound)
    b = jax.random.uniform(kb, (out_features,), jnp.float32, -bound, bound)
    return w, b


def make_fair_model_params(key, input_size, output_size, n_groups, layer_width):
    # n_hidden = 1 (as in the module docstring example).
    k0, k1, k2, k3 = jax.random.split(key, 4)
    model_lin = _linear_init(k0, output_size, input_size)   # wrapped "pretrained" model
    adv_l1 = _linear_init(k1, layer_width, output_size)
    adv_l2 = _linear_init(k2, layer_width, layer_width)
    adv_l3 = _linear_init(k3, n_groups, layer_width)
    return (model_lin, adv_l1, adv_l2, adv_l3)


# Pure-JAX reference using the same bf16-quantized operands / f32 accumulation.
def _reference_forward(x, params):
    (wm, bm), (w1, b1), (w2, b2), (w3, b3) = params
    q = lambda a: a.astype(jnp.bfloat16).astype(jnp.float32)
    pred = q(x) @ q(wm).T + bm
    h = jnp.maximum(q(pred) @ q(w1).T + b1, 0.0)
    h = jnp.maximum(q(h) @ q(w2).T + b2, 0.0)
    adv = q(h) @ q(w3).T + b3
    return pred, adv


# TODO(synk): FairModel.fit (adversarial training loop, losses, Adam updates) is host-side
# training logic, not part of forward(), and is not implemented as a kernel.


if __name__ == "__main__":
    key = jax.random.PRNGKey(0)
    k_params, k_x, k_x_big = jax.random.split(key, 3)

    # Small shapes consistent with the module's docstring example.
    batch, input_size, output_size, n_groups, layer_width = 8, 4, 1, 2, 10

    params = make_fair_model_params(k_params, input_size, output_size, n_groups, layer_width)
    padded_params, out_size, n_grp = prepare_fair_model_params(params)

    # --- small batch (single grid step) ---
    x = jax.random.normal(k_x, (batch, input_size), jnp.float32)
    pred, adv = fair_model_forward(x, padded_params, out_size=out_size, n_groups=n_grp)
    jax.block_until_ready((pred, adv))

    pred_ref, adv_ref = _reference_forward(x, params)
    assert pred.shape == (batch, output_size) and adv.shape == (batch, n_groups)
    assert jnp.allclose(pred, pred_ref, atol=1e-3, rtol=1e-3)
    assert jnp.allclose(adv, adv_ref, atol=1e-3, rtol=1e-3)

    # --- larger batch (exercises the multi-step pipelined batch grid) ---
    big_batch = 2048
    x_big = jax.random.normal(k_x_big, (big_batch, input_size), jnp.float32)
    pred_b, adv_b = fair_model_forward(x_big, padded_params, out_size=out_size, n_groups=n_grp)
    jax.block_until_ready((pred_b, adv_b))

    pred_b_ref, adv_b_ref = _reference_forward(x_big, params)
    assert pred_b.shape == (big_batch, output_size) and adv_b.shape == (big_batch, n_groups)
    assert jnp.allclose(pred_b, pred_b_ref, atol=1e-3, rtol=1e-3)
    assert jnp.allclose(adv_b, adv_b_ref, atol=1e-3, rtol=1e-3)

    print("KERNEL_OK")
</pallas_src>

<mosaic_0001>
module attributes {stable_mosaic.version = 11 : i64} {
  func.func @_fair_forward_kernel(%arg0: i32, %arg1: memref<8x4xbf16, #tpu.memory_space<vmem>>, %arg2: memref<4x128xbf16, #tpu.memory_space<vmem>>, %arg3: memref<1x128xf32, #tpu.memory_space<vmem>>, %arg4: memref<128x128xbf16, #tpu.memory_space<vmem>>, %arg5: memref<1x128xf32, #tpu.memory_space<vmem>>, %arg6: memref<128x128xbf16, #tpu.memory_space<vmem>>, %arg7: memref<1x128xf32, #tpu.memory_space<vmem>>, %arg8: memref<128x128xbf16, #tpu.memory_space<vmem>>, %arg9: memref<1x128xf32, #tpu.memory_space<vmem>>, %arg10: memref<8x128xf32, #tpu.memory_space<vmem>>, %arg11: memref<8x128xf32, #tpu.memory_space<vmem>>) attributes {dimension_semantics = [#tpu.dimension_semantics<parallel>], iteration_bounds = array<i64: 1>, scalar_prefetch = 0 : i64, scratch_operands = 0 : i64, tpu.core_type = #tpu.core_type<tc>, window_params = [{transform_indices = @transform_0, window_bounds = array<i64: 8, 4>}, {pipeline_mode = #tpu.pipeline_mode<synchronous>, transform_indices = @transform_1, window_bounds = array<i64: 4, 128>}, {pipeline_mode = #tpu.pipeline_mode<synchronous>, transform_indices = @transform_2, window_bounds = array<i64: 1, 128>}, {pipeline_mode = #tpu.pipeline_mode<synchronous>, transform_indices = @transform_3, window_bounds = array<i64: 128, 128>}, {pipeline_mode = #tpu.pipeline_mode<synchronous>, transform_indices = @transform_4, window_bounds = array<i64: 1, 128>}, {pipeline_mode = #tpu.pipeline_mode<synchronous>, transform_indices = @transform_5, window_bounds = array<i64: 128, 128>}, {pipeline_mode = #tpu.pipeline_mode<synchronous>, transform_indices = @transform_6, window_bounds = array<i64: 1, 128>}, {pipeline_mode = #tpu.pipeline_mode<synchronous>, transform_indices = @transform_7, window_bounds = array<i64: 128, 128>}, {pipeline_mode = #tpu.pipeline_mode<synchronous>, transform_indices = @transform_8, window_bounds = array<i64: 1, 128>}, {transform_indices = @transform_9, window_bounds = array<i64: 8, 128>}, {transform_indices = @transform_10, window_bounds = array<i64: 8, 128>}]} {
    %c0 = arith.constant 0 : index
    %c0_0 = arith.constant 0 : index
    %0 = vector.load %arg3[%c0, %c0_0] : memref<1x128xf32, #tpu.memory_space<vmem>>, vector<1x128xf32>
    %c0_1 = arith.constant 0 : index
    %c0_2 = arith.constant 0 : index
    %1 = vector.load %arg5[%c0_1, %c0_2] : memref<1x128xf32, #tpu.memory_space<vmem>>, vector<1x128xf32>
    %c0_3 = arith.constant 0 : index
    %c0_4 = arith.constant 0 : index
    %2 = vector.load %arg7[%c0_3, %c0_4] : memref<1x128xf32, #tpu.memory_space<vmem>>, vector<1x128xf32>
    %c0_5 = arith.constant 0 : index
    %c0_6 = arith.constant 0 : index
    %3 = vector.load %arg9[%c0_5, %c0_6] : memref<1x128xf32, #tpu.memory_space<vmem>>, vector<1x128xf32>
    %c0_7 = arith.constant 0 : index
    %c0_8 = arith.constant 0 : index
    %4 = vector.load %arg1[%c0_7, %c0_8] : memref<8x4xbf16, #tpu.memory_space<vmem>>, vector<8x4xbf16>
    %c0_9 = arith.constant 0 : index
    %c0_10 = arith.constant 0 : index
    %5 = vector.load %arg2[%c0_9, %c0_10] : memref<4x128xbf16, #tpu.memory_space<vmem>>, vector<4x128xbf16>
    %cst = arith.constant dense<0.000000e+00> : vector<8x128xf32>
    %6 = tpu.matmul %4, %5, %cst {dimension_numbers = #tpu.dot_dimension_numbers<[1], [0], [0], [1], [0, 0, 1, 1], [], []>} : vector<8x4xbf16>, vector<4x128xbf16>, vector<8x128xf32> -> vector<8x128xf32>
    %7 = vector.broadcast %0 : vector<1x128xf32> to vector<8x128xf32>
    %8 = arith.addf %6, %7 : vector<8x128xf32>
    %c0_11 = arith.constant 0 : index
    %c0_12 = arith.constant 0 : index
    %9 = vector.load %arg10[%c0_11, %c0_12] : memref<8x128xf32, #tpu.memory_space<vmem>>, vector<8x128xf32>
    tpu.vector_store %arg10[%c0_11, %c0_12], %8 {strides = array<i32>} : memref<8x128xf32, #tpu.memory_space<vmem>>, vector<8x128xf32>,
    %10 = arith.truncf %8 : vector<8x128xf32> to vector<8x128xbf16>
    %c0_13 = arith.constant 0 : index
    %c0_14 = arith.constant 0 : index
    %11 = vector.load %arg4[%c0_13, %c0_14] : memref<128x128xbf16, #tpu.memory_space<vmem>>, vector<128x128xbf16>
    %cst_15 = arith.constant dense<0.000000e+00> : vector<8x128xf32>
    %12 = tpu.matmul %10, %11, %cst_15 {dimension_numbers = #tpu.dot_dimension_numbers<[1], [0], [0], [1], [0, 0, 1, 1], [], []>} : vector<8x128xbf16>, vector<128x128xbf16>, vector<8x128xf32> -> vector<8x128xf32>
    %13 = vector.broadcast %1 : vector<1x128xf32> to vector<8x128xf32>
    %14 = arith.addf %12, %13 : vector<8x128xf32>
    %cst_16 = arith.constant 0.000000e+00 : f32
    %15 = vector.broadcast %cst_16 : f32 to vector<8x128xf32>
    %16 = arith.maximumf %14, %15 : vector<8x128xf32>
    %17 = arith.truncf %16 : vector<8x128xf32> to vector<8x128xbf16>
    %c0_17 = arith.constant 0 : index
    %c0_18 = arith.constant 0 : index
    %18 = vector.load %arg6[%c0_17, %c0_18] : memref<128x128xbf16, #tpu.memory_space<vmem>>, vector<128x128xbf16>
    %cst_19 = arith.constant dense<0.000000e+00> : vector<8x128xf32>
    %19 = tpu.matmul %17, %18, %cst_19 {dimension_numbers = #tpu.dot_dimension_numbers<[1], [0], [0], [1], [0, 0, 1, 1], [], []>} : vector<8x128xbf16>, vector<128x128xbf16>, vector<8x128xf32> -> vector<8x128xf32>
    %20 = vector.broadcast %2 : vector<1x128xf32> to vector<8x128xf32>
    %21 = arith.addf %19, %20 : vector<8x128xf32>
    %cst_20 = arith.constant 0.000000e+00 : f32
    %22 = vector.broadcast %cst_20 : f32 to vector<8x128xf32>
    %23 = arith.maximumf %21, %22 : vector<8x128xf32>
    %24 = arith.truncf %23 : vector<8x128xf32> to vector<8x128xbf16>
    %c0_21 = arith.constant 0 : index
    %c0_22 = arith.constant 0 : index
    %25 = vector.load %arg8[%c0_21, %c0_22] : memref<128x128xbf16, #tpu.memory_space<vmem>>, vector<128x128xbf16>
    %cst_23 = arith.constant dense<0.000000e+00> : vector<8x128xf32>
    %26 = tpu.matmul %24, %25, %cst_23 {dimension_numbers = #tpu.dot_dimension_numbers<[1], [0], [0], [1], [0, 0, 1, 1], [], []>} : vector<8x128xbf16>, vector<128x128xbf16>, vector<8x128xf32> -> vector<8x128xf32>
    %27 = vector.broadcast %3 : vector<1x128xf32> to vector<8x128xf32>
    %28 = arith.addf %26, %27 : vector<8x128xf32>
    %c0_24 = arith.constant 0 : index
    %c0_25 = arith.constant 0 : index
    %29 = vector.load %arg11[%c0_24, %c0_25] : memref<8x128xf32, #tpu.memory_space<vmem>>, vector<8x128xf32>
    tpu.vector_store %arg11[%c0_24, %c0_25], %28 {strides = array<i32>} : memref<8x128xf32, #tpu.memory_space<vmem>>, vector<8x128xf32>,
    return
  }
  func.func @transform_0(%arg0: i32) -> (i32, i32) {
    %c0_i32 = arith.constant 0 : i32
    %c0_i32_0 = arith.constant 0 : i32
    return %arg0, %c0_i32 : i32, i32
  }
  func.func @transform_1(%arg0: i32) -> (i32, i32) {
    %c0_i32 = arith.constant 0 : i32
    %c0_i32_0 = arith.constant 0 : i32
    %c0_i32_1 = arith.constant 0 : i32
    return %c0_i32, %c0_i32_0 : i32, i32
  }
  func.func @transform_2(%arg0: i32) -> (i32, i32) {
    %c0_i32 = arith.constant 0 : i32
    %c0_i32_0 = arith.constant 0 : i32
    %c0_i32_1 = arith.constant 0 : i32
    return %c0_i32, %c0_i32_0 : i32, i32
  }
  func.func @transform_3(%arg0: i32) -> (i32, i32) {
    %c0_i32 = arith.constant 0 : i32
    %c0_i32_0 = arith.constant 0 : i32
    %c0_i32_1 = arith.constant 0 : i32
    return %c0_i32, %c0_i32_0 : i32, i32
  }
  func.func @transform_4(%arg0: i32) -> (i32, i32) {
    %c0_i32 = arith.constant 0 : i32
    %c0_i32_0 = arith.constant 0 : i32
    %c0_i32_1 = arith.constant 0 : i32
    return %c0_i32, %c0_i32_0 : i32, i32
  }
  func.func @transform_5(%arg0: i32) -> (i32, i32) {
    %c0_i32 = arith.constant 0 : i32
    %c0_i32_0 = arith.constant 0 : i32
    %c0_i32_1 = arith.constant 0 : i32
    return %c0_i32, %c0_i32_0 : i32, i32
  }
  func.func @transform_6(%arg0: i32) -> (i32, i32) {
    %c0_i32 = arith.constant 0 : i32
    %c0_i32_0 = arith.constant 0 : i32
    %c0_i32_1 = arith.constant 0 : i32
    return %c0_i32, %c0_i32_0 : i32, i32
  }
  func.func @transform_7(%arg0: i32) -> (i32, i32) {
    %c0_i32 = arith.constant 0 : i32
    %c0_i32_0 = arith.constant 0 : i32
    %c0_i32_1 = arith.constant 0 : i32
    return %c0_i32, %c0_i32_0 : i32, i32
  }
  func.func @transform_8(%arg0: i32) -> (i32, i32) {
    %c0_i32 = arith.constant 0 : i32
    %c0_i32_0 = arith.constant 0 : i32
    %c0_i32_1 = arith.constant 0 : i32
    return %c0_i32, %c0_i32_0 : i32, i32
  }
  func.func @transform_9(%arg0: i32) -> (i32, i32) {
    %c0_i32 = arith.constant 0 : i32
    %c0_i32_0 = arith.constant 0 : i32
    return %arg0, %c0_i32 : i32, i32
  }
  func.func @transform_10(%arg0: i32) -> (i32, i32) {
    %c0_i32 = arith.constant 0 : i32
    %c0_i32_0 = arith.constant 0 : i32
    return %arg0, %c0_i32 : i32, i32
  }
}

</mosaic_0001>

<llo_original>
// kernel: fair_model_forward.1
$region0: #{fair_model_forward.1}
  #allocation0 [shape = 'u32[]', space=smem, size = 0x4, offset = 0x4, fixed_abs, tag = 'smem constant byte address 0x4 - core index']
  #allocation1 [shape = 'u32[144,128]{1,0:T(1,128)}', space=vmem, size = 0x12000, scoped, tag = 'internal scratch']
  %s0 = inlined_call_operand.vmem [shape: bf16[8,4], index: 0, kind: input, shape index: {}]
  %s1 = inlined_call_operand.vmem [shape: bf16[4,128], index: 1, kind: input, shape index: {}]
  %s2 = inlined_call_operand.vmem [shape: f32[1,128], index: 2, kind: input, shape index: {}]
  %s3 = inlined_call_operand.hbm [shape: bf16[128,128], index: 3, kind: input, shape index: {}]
  %s4 = inlined_call_operand.vmem [shape: f32[1,128], index: 4, kind: input, shape index: {}]
  %s5 = inlined_call_operand.hbm [shape: bf16[128,128], index: 5, kind: input, shape index: {}]
  %s6 = inlined_call_operand.vmem [shape: f32[1,128], index: 6, kind: input, shape index: {}]
  %s7 = inlined_call_operand.hbm [shape: bf16[128,128], index: 7, kind: input, shape index: {}]
  %s8 = inlined_call_operand.vmem [shape: f32[1,128], index: 8, kind: input, shape index: {}]
  %s9 = inlined_call_operand.vmem [shape: f32[8,128], index: 9, kind: output, shape index: {0}]
  %s10 = inlined_call_operand.vmem [shape: f32[8,128], index: 10, kind: output, shape index: {1}]
  %11 = xla_tuple %s9, %s10
  %s12 = sld [smem:[#allocation0]]
  $region66: #{fair_model_forward.1} parent=0
    _
  %s14 = ssub.s32 1, %s12
  %s15 = scalar_select 0, %s14, %s12
  $region1: #{fair_model_forward.1} parent=0
    #allocation2 [shape = 'u8[32768]{0}', space=vmem, size = 0x8000, scoped, tag = 'input window, operand 3, single buffered']
    #allocation3 [shape = 's32[1]{0}', space=sflag, size = 0x4, scoped, tag = 'scoped memory for fair_model_forward.1']
    #allocation4 [shape = 'u8[32768]{0}', space=vmem, size = 0x8000, scoped, tag = 'input window, operand 5, single buffered']
    #allocation5 [shape = 's32[1]{0}', space=sflag, size = 0x4, scoped, tag = 'scoped memory for fair_model_forward.1']
    #allocation6 [shape = 'u8[32768]{0}', space=vmem, size = 0x8000, scoped, tag = 'input window, operand 7, single buffered']
    %16 = vsyncpa [#allocation3], 0
    %17 = vsyncpa [#allocation5], 0
    // Predicated region
    $region2: #{fair_model_forward.1} parent=1 // pred_check
      _
    $region3: #{fair_model_forward.1} parent=1 // pred_check_branch
      %19 = sbr.rel (0) target = $region5
    $region4: #{fair_model_forward.1} parent=1 // pred_region
      _
    $region5: #{fair_model_forward.1} parent=1 // pred_fallthru
      _
    // Predicated region
    $region6: #{fair_model_forward.1} parent=1 // pred_check
      _
    $region7: #{fair_model_forward.1} parent=1 // pred_check_branch
      %21 = sbr.rel (0) target = $region9
    $region8: #{fair_model_forward.1} parent=1 // pred_region
      _
    $region9: #{fair_model_forward.1} parent=1 // pred_fallthru
      _
    // Predicated region
    $region10: #{fair_model_forward.1} parent=1 // pred_check
      _
    $region11: #{fair_model_forward.1} parent=1 // pred_check_branch
      %23 = sbr.rel (0) target = $region13
    $region12: #{fair_model_forward.1} parent=1 // pred_region
      _
    $region13: #{fair_model_forward.1} parent=1 // pred_fallthru
      _
    // Predicated region
    $region14: #{fair_model_forward.1} parent=1 // pred_check
      _
    $region15: #{fair_model_forward.1} parent=1 // pred_check_branch
      %25 = sbr.rel (0) target = $region17
    $region16: #{fair_model_forward.1} parent=1 // pred_region
      %s27 = ssub.s32 1024, 1024
      %28 = vsyncadd [#allocation3], %s27
      %s29 = sshll.u32 [#allocation2], 4
      %s30 = int_to_ptr.vmem [resolvable:$true] %s29
      %35 = dma.hbm_to_vmem [thread:$0]  %s3, 1024, %s30, [#allocation3], 64, 64, 4
    $region17: #{fair_model_forward.1} parent=1 // pred_fallthru
      _
    // Predicated region
    $region18: #{fair_model_forward.1} parent=1 // pred_check
      _
    $region19: #{fair_model_forward.1} parent=1 // pred_check_branch
      %37 = sbr.rel (0) target = $region21
    $region20: #{fair_model_forward.1} parent=1 // pred_region
      _
    $region21: #{fair_model_forward.1} parent=1 // pred_fallthru
      _
    // Predicated region
    $region22: #{fair_model_forward.1} parent=1 // pred_check
      _
    $region23: #{fair_model_forward.1} parent=1 // pred_check_branch
      %39 = sbr.rel (0) target = $region25
    $region24: #{fair_model_forward.1} parent=1 // pred_region
      %s41 = ssub.s32 1024, 1024
      %42 = vsyncadd [#allocation5], %s41
      %s43 = sshll.u32 [#allocation4], 4
      %s44 = int_to_ptr.vmem [resolvable:$true] %s43
      %49 = dma.hbm_to_vmem [thread:$0]  %s5, 1024, %s44, [#allocation5], 64, 64, 4
    $region25: #{fair_model_forward.1} parent=1 // pred_fallthru
      _
    // Predicated region
    $region26: #{fair_model_forward.1} parent=1 // pred_check
      _
    $region27: #{fair_model_forward.1} parent=1 // pred_check_branch
      %51 = sbr.rel (0) target = $region29
    $region28: #{fair_model_forward.1} parent=1 // pred_region
      _
    $region29: #{fair_model_forward.1} parent=1 // pred_fallthru
      _
    // Predicated region
    $region30: #{fair_model_forward.1} parent=1 // pred_check
      _
    $region31: #{fair_model_forward.1} parent=1 // pred_check_branch
      %53 = sbr.rel (0) target = $region33
    $region32: #{fair_model_forward.1} parent=1 // pred_region
      %s55 = ssub.s32 1024, 1024
      %56 = vsyncadd [#allocation5], %s55
      %s57 = sshll.u32 [#allocation6], 4
      %s58 = int_to_ptr.vmem [resolvable:$true] %s57
      %63 = dma.hbm_to_vmem [thread:$0]  %s7, 1024, %s58, [#allocation5], 64, 64, 4
    $region33: #{fair_model_forward.1} parent=1 // pred_fallthru
      _
    // Predicated region
    $region34: #{fair_model_forward.1} parent=1 // pred_check
      _
    $region35: #{fair_model_forward.1} parent=1 // pred_check_branch
      %65 = sbr.rel (0) target = $region37
    $region36: #{fair_model_forward.1} parent=1 // pred_region
      _
    $region37: #{fair_model_forward.1} parent=1 // pred_fallthru
      _
    // Predicated region
    $region38: #{fair_model_forward.1} parent=1 // pred_check
      _
    $region39: #{fair_model_forward.1} parent=1 // pred_check_branch
      %67 = sbr.rel (0) target = $region41
    $region40: #{fair_model_forward.1} parent=1 // pred_region
      %68 = dma.done [#allocation3], 1024
    $region41: #{fair_model_forward.1} parent=1 // pred_fallthru
      _
    // Predicated region
    $region42: #{fair_model_forward.1} parent=1 // pred_check
      _
    $region43: #{fair_model_forward.1} parent=1 // pred_check_branch
      %70 = sbr.rel (0) target = $region45
    $region44: #{fair_model_forward.1} parent=1 // pred_region
      %71 = dma.done [#allocation5], 1024
    $region45: #{fair_model_forward.1} parent=1 // pred_fallthru
      _
    // Predicated region
    $region46: #{fair_model_forward.1} parent=1 // pred_check
      _
    $region47: #{fair_model_forward.1} parent=1 // pred_check_branch
      %73 = sbr.rel (0) target = $region49
    $region48: #{fair_model_forward.1} parent=1 // pred_region
      %74 = dma.done [#allocation5], 1024
    $region49: #{fair_model_forward.1} parent=1 // pred_fallthru
      _
    %v76 = vld [vmem:[%s2] sm:$0x1]
    %v77 = vld [vmem:[%s4] sm:$0x1]
    %v78 = vld [vmem:[%s6] sm:$0x1]
    %v79 = vld [vmem:[%s8] sm:$0x1]
    %v80 = vld [vmem:[%s0] sm:$0xf]
    %v81 = vld [vmem:[%s1] sm:$0x3]
    %v83 = vlaneseq
    %v84 = vshrl.u32 %v83, 7
    %v85 = vsub.s32 0, %v84
    %v86 = vrot.slane %v76, %v85
    %vm88 = vcmask 31744
    %v90 = vsel %vm88, %v80, 0
    %vm92 = vcmask 1041408
    %v94 = vsel %vm92, %v81, 0
    %96 = vmatprep.subr.bf16.mxu0 0
    %97 = vmatpush1.bf16.msra.mxu0 %v94
    %98 = vmatprep.subr.bf16.mxu0 0
    %99 = vmatpush1.bf16.msra.mxu0 0
    %100 = vmatprep.subr.bf16.mxu0 0
    %101 = vmatpush1.bf16.msra.mxu0 0
    %102 = vmatprep.subr.bf16.mxu0 0
    %103 = vmatpush1.bf16.msra.mxu0 0
    %104 = vmatprep.subr.bf16.mxu0 0
    %105 = vmatpush1.bf16.msra.mxu0 0
    %106 = vmatprep.subr.bf16.mxu0 0
    %107 = vmatpush1.bf16.msra.mxu0 0
    %108 = vmatprep.subr.bf16.mxu0 0
    %109 = vmatpush1.bf16.msra.mxu0 0
    %110 = vmatprep.subr.bf16.mxu0 0
    %111 = vmatpush1.bf16.msra.mxu0 0
    %112 = vmatprep.subr.bf16.mxu0 0
    %113 = vmatpush1.bf16.msra.mxu0 0
    %114 = vmatprep.subr.bf16.mxu0 0
    %115 = vmatpush1.bf16.msra.mxu0 0
    %116 = vmatprep.subr.bf16.mxu0 0
    %117 = vmatpush1.bf16.msra.mxu0 0
    %118 = vmatprep.subr.bf16.mxu0 0
    %119 = vmatpush1.bf16.msra.mxu0 0
    %120 = vmatprep.subr.bf16.mxu0 0
    %121 = vmatpush1.bf16.msra.mxu0 0
    %122 = vmatprep.subr.bf16.mxu0 0
    %123 = vmatpush1.bf16.msra.mxu0 0
    %124 = vmatprep.subr.bf16.mxu0 0
    %125 = vmatpush1.bf16.msra.mxu0 0
    %126 = vmatprep.subr.bf16.mxu0 0
    %127 = vmatpush1.bf16.msra.mxu0 0
    %128 = vmatprep.mubr.bf16.mxu0 0
    %129 = vmatmul.mubr.bf16.gmra.mrb[0].mxu0 %v90
    %v130 = vpop.f32.mrb[0].mxu0
    %v131 = vadd.f32 %v86, %v130
    %v132 = vpop.f32.mrb[0].mxu0
    %v133 = vpop.f32.mrb[0].mxu0
    %v134 = vpop.f32.mrb[0].mxu0
    %135 = vdwg.mxu0
    %136 = vst [vmem:[%s9] sm:$0xff] %v131
    %v137 = vpack.c.bf16 %v131, %v131
    %v138 = vld [vmem:[#allocation2] sm:$0xf]
    %v139 = vld [vmem:[#allocation2 + $0x4] sm:$0xf]
    %v140 = vld [vmem:[#allocation2 + $0x8] sm:$0xf]
    %v141 = vld [vmem:[#allocation2 + $0xc] sm:$0xf]
    %v142 = vld [vmem:[#allocation2 + $0x10] sm:$0xf]
    %v143 = vld [vmem:[#allocation2 + $0x14] sm:$0xf]
    %v144 = vld [vmem:[#allocation2 + $0x18] sm:$0xf]
    %v145 = vld [vmem:[#allocation2 + $0x1c] sm:$0xf]
    %v146 = vld [vmem:[#allocation2 + $0x20] sm:$0xf]
    %v147 = vld [vmem:[#allocation2 + $0x24] sm:$0xf]
    %v148 = vld [vmem:[#allocation2 + $0x28] sm:$0xf]
    %v149 = vld [vmem:[#allocation2 + $0x2c] sm:$0xf]
    %v150 = vld [vmem:[#allocation2 + $0x30] sm:$0xf]
    %v151 = vld [vmem:[#allocation2 + $0x34] sm:$0xf]
    %v152 = vld [vmem:[#allocation2 + $0x38] sm:$0xf]
    %v153 = vld [vmem:[#allocation2 + $0x3c] sm:$0xf]
    %v155 = vlaneseq
    %v156 = vshrl.u32 %v155, 7
    %v157 = vsub.s32 0, %v156
    %v158 = vrot.slane %v77, %v157
    %v176 = vunpack.c.l.b16 %v138
    %v177 = vunpack.c.l.b16 %v139
    %v178 = vunpack.c.l.b16 %v140
    %v179 = vunpack.c.l.b16 %v141
    %v180 = vunpack.c.l.b16 %v142
    %v181 = vunpack.c.l.b16 %v143
    %v182 = vunpack.c.l.b16 %v144
    %v183 = vunpack.c.l.b16 %v145
    %v184 = vunpack.c.l.b16 %v146
    %v185 = vunpack.c.l.b16 %v147
    %v186 = vunpack.c.l.b16 %v148
    %v187 = vunpack.c.l.b16 %v149
    %v188 = vunpack.c.l.b16 %v150
    %v189 = vunpack.c.l.b16 %v151
    %v190 = vunpack.c.l.b16 %v152
    %v191 = vunpack.c.l.b16 %v153
    %v192 = vpack.c.b16 %v177, %v176
    %v193 = vpack.c.b16 %v179, %v178
    %v194 = vpack.c.b16 %v181, %v180
    %v195 = vpack.c.b16 %v183, %v182
    %v196 = vpack.c.b16 %v185, %v184
    %v197 = vpack.c.b16 %v187, %v186
    %v198 = vpack.c.b16 %v189, %v188
    %v199 = vpack.c.b16 %v191, %v190
    %208 = vmatprep.subr.bf16.mxu0 0
    %209 = vmatpush1.bf16.msra.mxu0 %v192
    %210 = vmatprep.subr.bf16.mxu0 0
    %211 = vmatpush1.bf16.msra.mxu0 %v193
    %212 = vmatprep.subr.bf16.mxu0 0
    %213 = vmatpush1.bf16.msra.mxu0 %v194
    %214 = vmatprep.subr.bf16.mxu0 0
    %215 = vmatpush1.bf16.msra.mxu0 %v195
    %216 = vmatprep.subr.bf16.mxu0 0
    %217 = vmatpush1.bf16.msra.mxu0 %v196
    %218 = vmatprep.subr.bf16.mxu0 0
    %219 = vmatpush1.bf16.msra.mxu0 %v197
    %220 = vmatprep.subr.bf16.mxu0 0
    %221 = vmatpush1.bf16.msra.mxu0 %v198
    %222 = vmatprep.subr.bf16.mxu0 0
    %223 = vmatpush1.bf16.msra.mxu0 %v199
    %224 = vmatprep.subr.bf16.mxu0 0
    %225 = vmatpush1.bf16.msra.mxu0 0
    %226 = vmatprep.subr.bf16.mxu0 0
    %227 = vmatpush1.bf16.msra.mxu0 0
    %228 = vmatprep.subr.bf16.mxu0 0
    %229 = vmatpush1.bf16.msra.mxu0 0
    %230 = vmatprep.subr.bf16.mxu0 0
    %231 = vmatpush1.bf16.msra.mxu0 0
    %232 = vmatprep.subr.bf16.mxu0 0
    %233 = vmatpush1.bf16.msra.mxu0 0
    %234 = vmatprep.subr.bf16.mxu0 0
    %235 = vmatpush1.bf16.msra.mxu0 0
    %236 = vmatprep.subr.bf16.mxu0 0
    %237 = vmatpush1.bf16.msra.mxu0 0
    %238 = vmatprep.subr.bf16.mxu0 0
    %239 = vmatpush1.bf16.msra.mxu0 0
    %240 = vmatprep.mubr.bf16.mxu0 0
    %241 = vmatmul.mubr.bf16.gmra.mrb[0].mxu0 %v137
    %v242 = vpop.f32.mrb[0].mxu0
    %v243 = vadd.f32 %v158, %v242
    %v244 = vpop.f32.mrb[0].mxu0
    %v245 = vpop.f32.mrb[0].mxu0
    %v246 = vpop.f32.mrb[0].mxu0
    %247 = vdwg.mxu0
    %v248 = vmax.f32 %v243, 0.0
    %v249 = vpack.c.bf16 %v248, %v248
    %v250 = vld [vmem:[#allocation4] sm:$0xf]
    %v251 = vld [vmem:[#allocation4 + $0x4] sm:$0xf]
    %v252 = vld [vmem:[#allocation4 + $0x8] sm:$0xf]
    %v253 = vld [vmem:[#allocation4 + $0xc] sm:$0xf]
    %v254 = vld [vmem:[#allocation4 + $0x10] sm:$0xf]
    %v255 = vld [vmem:[#allocation4 + $0x14] sm:$0xf]
    %v256 = vld [vmem:[#allocation4 + $0x18] sm:$0xf]
    %v257 = vld [vmem:[#allocation4 + $0x1c] sm:$0xf]
    %v258 = vld [vmem:[#allocation4 + $0x20] sm:$0xf]
    %v259 = vld [vmem:[#allocation4 + $0x24] sm:$0xf]
    %v260 = vld [vmem:[#allocation4 + $0x28] sm:$0xf]
    %v261 = vld [vmem:[#allocation4 + $0x2c] sm:$0xf]
    %v262 = vld [vmem:[#allocation4 + $0x30] sm:$0xf]
    %v263 = vld [vmem:[#allocation4 + $0x34] sm:$0xf]
    %v264 = vld [vmem:[#allocation4 + $0x38] sm:$0xf]
    %v265 = vld [vmem:[#allocation4 + $0x3c] sm:$0xf]
    %v267 = vlaneseq
    %v268 = vshrl.u32 %v267, 7
    %v269 = vsub.s32 0, %v268
    %v270 = vrot.slane %v78, %v269
    %v288 = vunpack.c.l.b16 %v250
    %v289 = vunpack.c.l.b16 %v251
    %v290 = vunpack.c.l.b16 %v252
    %v291 = vunpack.c.l.b16 %v253
    %v292 = vunpack.c.l.b16 %v254
    %v293 = vunpack.c.l.b16 %v255
    %v294 = vunpack.c.l.b16 %v256
    %v295 = vunpack.c.l.b16 %v257
    %v296 = vunpack.c.l.b16 %v258
    %v297 = vunpack.c.l.b16 %v259
    %v298 = vunpack.c.l.b16 %v260
    %v299 = vunpack.c.l.b16 %v261
    %v300 = vunpack.c.l.b16 %v262
    %v301 = vunpack.c.l.b16 %v263
    %v302 = vunpack.c.l.b16 %v264
    %v303 = vunpack.c.l.b16 %v265
    %v304 = vpack.c.b16 %v289, %v288
    %v305 = vpack.c.b16 %v291, %v290
    %v306 = vpack.c.b16 %v293, %v292
    %v307 = vpack.c.b16 %v295, %v294
    %v308 = vpack.c.b16 %v297, %v296
    %v309 = vpack.c.b16 %v299, %v298
    %v310 = vpack.c.b16 %v301, %v300
    %v311 = vpack.c.b16 %v303, %v302
    %320 = vmatprep.subr.bf16.mxu0 0
    %321 = vmatpush1.bf16.msra.mxu0 %v304
    %322 = vmatprep.subr.bf16.mxu0 0
    %323 = vmatpush1.bf16.msra.mxu0 %v305
    %324 = vmatprep.subr.bf16.mxu0 0
    %325 = vmatpush1.bf16.msra.mxu0 %v306
    %326 = vmatprep.subr.bf16.mxu0 0
    %327 = vmatpush1.bf16.msra.mxu0 %v307
    %328 = vmatprep.subr.bf16.mxu0 0
    %329 = vmatpush1.bf16.msra.mxu0 %v308
    %330 = vmatprep.subr.bf16.mxu0 0
    %331 = vmatpush1.bf16.msra.mxu0 %v309
    %332 = vmatprep.subr.bf16.mxu0 0
    %333 = vmatpush1.bf16.msra.mxu0 %v310
    %334 = vmatprep.subr.bf16.mxu0 0
    %335 = vmatpush1.bf16.msra.mxu0 %v311
    %336 = vmatprep.subr.bf16.mxu0 0
    %337 = vmatpush1.bf16.msra.mxu0 0
    %338 = vmatprep.subr.bf16.mxu0 0
    %339 = vmatpush1.bf16.msra.mxu0 0
    %340 = vmatprep.subr.bf16.mxu0 0
    %341 = vmatpush1.bf16.msra.mxu0 0
    %342 = vmatprep.subr.bf16.mxu0 0
    %343 = vmatpush1.bf16.msra.mxu0 0
    %344 = vmatprep.subr.bf16.mxu0 0
    %345 = vmatpush1.bf16.msra.mxu0 0
    %346 = vmatprep.subr.bf16.mxu0 0
    %347 = vmatpush1.bf16.msra.mxu0 0
    %348 = vmatprep.subr.bf16.mxu0 0
    %349 = vmatpush1.bf16.msra.mxu0 0
    %350 = vmatprep.subr.bf16.mxu0 0
    %351 = vmatpush1.bf16.msra.mxu0 0
    %352 = vmatprep.mubr.bf16.mxu0 0
    %353 = vmatmul.mubr.bf16.gmra.mrb[0].mxu0 %v249
    %v354 = vpop.f32.mrb[0].mxu0
    %v355 = vadd.f32 %v270, %v354
    %v356 = vpop.f32.mrb[0].mxu0
    %v357 = vpop.f32.mrb[0].mxu0
    %v358 = vpop.f32.mrb[0].mxu0
    %359 = vdwg.mxu0
    %v360 = vmax.f32 %v355, 0.0
    %v361 = vpack.c.bf16 %v360, %v360
    %v362 = vld [vmem:[#allocation6] sm:$0xf]
    %v363 = vld [vmem:[#allocation6 + $0x4] sm:$0xf]
    %v364 = vld [vmem:[#allocation6 + $0x8] sm:$0xf]
    %v365 = vld [vmem:[#allocation6 + $0xc] sm:$0xf]
    %v366 = vld [vmem:[#allocation6 + $0x10] sm:$0xf]
    %v367 = vld [vmem:[#allocation6 + $0x14] sm:$0xf]
    %v368 = vld [vmem:[#allocation6 + $0x18] sm:$0xf]
    %v369 = vld [vmem:[#allocation6 + $0x1c] sm:$0xf]
    %v370 = vld [vmem:[#allocation6 + $0x20] sm:$0xf]
    %v371 = vld [vmem:[#allocation6 + $0x24] sm:$0xf]
    %v372 = vld [vmem:[#allocation6 + $0x28] sm:$0xf]
    %v373 = vld [vmem:[#allocation6 + $0x2c] sm:$0xf]
    %v374 = vld [vmem:[#allocation6 + $0x30] sm:$0xf]
    %v375 = vld [vmem:[#allocation6 + $0x34] sm:$0xf]
    %v376 = vld [vmem:[#allocation6 + $0x38] sm:$0xf]
    %v377 = vld [vmem:[#allocation6 + $0x3c] sm:$0xf]
    %v379 = vlaneseq
    %v380 = vshrl.u32 %v379, 7
    %v381 = vsub.s32 0, %v380
    %v382 = vrot.slane %v79, %v381
    %v400 = vunpack.c.l.b16 %v362
    %v401 = vunpack.c.l.b16 %v363
    %v402 = vunpack.c.l.b16 %v364
    %v403 = vunpack.c.l.b16 %v365
    %v404 = vunpack.c.l.b16 %v366
    %v405 = vunpack.c.l.b16 %v367
    %v406 = vunpack.c.l.b16 %v368
    %v407 = vunpack.c.l.b16 %v369
    %v408 = vunpack.c.l.b16 %v370
    %v409 = vunpack.c.l.b16 %v371
    %v410 = vunpack.c.l.b16 %v372
    %v411 = vunpack.c.l.b16 %v373
    %v412 = vunpack.c.l.b16 %v374
    %v413 = vunpack.c.l.b16 %v375
    %v414 = vunpack.c.l.b16 %v376
    %v415 = vunpack.c.l.b16 %v377
    %v416 = vpack.c.b16 %v401, %v400
    %v417 = vpack.c.b16 %v403, %v402
    %v418 = vpack.c.b16 %v405, %v404
    %v419 = vpack.c.b16 %v407, %v406
    %v420 = vpack.c.b16 %v409, %v408
    %v421 = vpack.c.b16 %v411, %v410
    %v422 = vpack.c.b16 %v413, %v412
    %v423 = vpack.c.b16 %v415, %v414
    %432 = vmatprep.subr.bf16.mxu0 0
    %433 = vmatpush1.bf16.msra.mxu0 %v416
    %434 = vmatprep.subr.bf16.mxu0 0
    %435 = vmatpush1.bf16.msra.mxu0 %v417
    %436 = vmatprep.subr.bf16.mxu0 0
    %437 = vmatpush1.bf16.msra.mxu0 %v418
    %438 = vmatprep.subr.bf16.mxu0 0
    %439 = vmatpush1.bf16.msra.mxu0 %v419
    %440 = vmatprep.subr.bf16.mxu0 0
    %441 = vmatpush1.bf16.msra.mxu0 %v420
    %442 = vmatprep.subr.bf16.mxu0 0
    %443 = vmatpush1.bf16.msra.mxu0 %v421
    %444 = vmatprep.subr.bf16.mxu0 0
    %445 = vmatpush1.bf16.msra.mxu0 %v422
    %446 = vmatprep.subr.bf16.mxu0 0
    %447 = vmatpush1.bf16.msra.mxu0 %v423
    %448 = vmatprep.subr.bf16.mxu0 0
    %449 = vmatpush1.bf16.msra.mxu0 0
    %450 = vmatprep.subr.bf16.mxu0 0
    %451 = vmatpush1.bf16.msra.mxu0 0
    %452 = vmatprep.subr.bf16.mxu0 0
    %453 = vmatpush1.bf16.msra.mxu0 0
    %454 = vmatprep.subr.bf16.mxu0 0
    %455 = vmatpush1.bf16.msra.mxu0 0
    %456 = vmatprep.subr.bf16.mxu0 0
    %457 = vmatpush1.bf16.msra.mxu0 0
    %458 = vmatprep.subr.bf16.mxu0 0
    %459 = vmatpush1.bf16.msra.mxu0 0
    %460 = vmatprep.subr.bf16.mxu0 0
    %461 = vmatpush1.bf16.msra.mxu0 0
    %462 = vmatprep.subr.bf16.mxu0 0
    %463 = vmatpush1.bf16.msra.mxu0 0
    %464 = vmatprep.mubr.bf16.mxu0 0
    %465 = vmatmul.mubr.bf16.gmra.mrb[0].mxu0 %v361
    %v466 = vpop.f32.mrb[0].mxu0
    %v467 = vadd.f32 %v382, %v466
    %v468 = vpop.f32.mrb[0].mxu0
    %v469 = vpop.f32.mrb[0].mxu0
    %v470 = vpop.f32.mrb[0].mxu0
    %471 = vdwg.mxu0
    %472 = vst [vmem:[%s10] sm:$0xff] %v467
    // Predicated region
    $region50: #{fair_model_forward.1} parent=1 // pred_check
      _
    $region51: #{fair_model_forward.1} parent=1 // pred_check_branch
      %474 = sbr.rel (0) target = $region53
    $region52: #{fair_model_forward.1} parent=1 // pred_region
      _
    $region53: #{fair_model_forward.1} parent=1 // pred_fallthru
      _
    // Predicated region
    $region54: #{fair_model_forward.1} parent=1 // pred_check
      _
    $region55: #{fair_model_forward.1} parent=1 // pred_check_branch
      %476 = sbr.rel (0) target = $region57
    $region56: #{fair_model_forward.1} parent=1 // pred_region
      _
    $region57: #{fair_model_forward.1} parent=1 // pred_fallthru
      _
    // Predicated region
    $region58: #{fair_model_forward.1} parent=1 // pred_check
      _
    $region59: #{fair_model_forward.1} parent=1 // pred_check_branch
      %478 = sbr.rel (0) target = $region61
    $region60: #{fair_model_forward.1} parent=1 // pred_region
      _
    $region61: #{fair_model_forward.1} parent=1 // pred_fallthru
      _
    // Predicated region
    $region62: #{fair_model_forward.1} parent=1 // pred_check
      _
    $region63: #{fair_model_forward.1} parent=1 // pred_check_branch
      %480 = sbr.rel (0) target = $region65
    $region64: #{fair_model_forward.1} parent=1 // pred_region
      _
    $region65: #{fair_model_forward.1} parent=1 // pred_fallthru
      _
    %481 = vsyncpa [#allocation3], 1
    %482 = vsyncpa [#allocation5], 1

</llo_original>
